<compile_context>
chip_gen: v5e
topology: v5e:2x2
jax: 0.10.0
libtpu: 0.0.40
codegen_flags: <defaults>
</compile_context>

<pallas_src>
import functools
import math

import jax
import jax.numpy as jnp
from jax import lax
from jax.experimental import pallas as pl
from jax.experimental.pallas import tpu as pltpu


def _round_up(x, m):
    return (x + m - 1) // m * m


def _pad_cols(x, width):
    pad = width - x.shape[-1]
    if pad == 0:
        return x
    return jnp.pad(x, [(0, 0)] * (x.ndim - 1) + [(0, pad)])


def _device_kind():
    try:
        return jax.devices()[0].device_kind.lower()
    except Exception:
        return ""


def _default_row_target():
    kind = _device_kind()
    if "v5" in kind:
        return 128
    if "v6" in kind:
        return 256
    if "v7" in kind or "7x" in kind:
        return 512
    return 256


def _vmem_ceiling_bytes():
    # Generation-aware VMEM ceiling, leaving ~8 MiB headroom for Mosaic internals.
    try:
        info = pltpu.get_tpu_info()
        cap = getattr(info, "vmem_capacity_bytes", None)
        if cap:
            return int(cap) - (8 << 20)
    except Exception:
        pass
    kind = _device_kind()
    if "v5" in kind or "v6" in kind:
        return 120 << 20          # 128 MiB physical VMEM
    return 56 << 20               # v7x / unknown: assume 64 MiB physical


def text_embedding_kernel(ids_ref, tab_hbm, pe_ref, b_ref, gamma_ref, beta_ref,
                          out_ref, gbuf, sem, *, tl, d_valid, window):
    bi = pl.program_id(0)          # batch row
    li = pl.program_id(1)          # sequence tile
    l0 = li * tl

    # ---- Gather `tl` fused-table rows from HBM: rolling DMA window ----------
    def start_row(r):
        tok = ids_ref[bi, l0 + r]
        pltpu.make_async_copy(tab_hbm.at[pl.ds(tok, 1)],
                              gbuf.at[pl.ds(r, 1)],
                              sem.at[r % window]).start()

    def wait_row(r):
        # Same shape as the started copy on this slot -> correct byte count.
        pltpu.make_async_copy(tab_hbm.at[pl.ds(0, 1)],
                              gbuf.at[pl.ds(r, 1)],
                              sem.at[r % window]).wait()

    n_prime = min(window, tl)
    for r in range(n_prime):                      # static unroll (<= window)
        start_row(r)

    if tl > window:
        def body(r, carry):
            wait_row(r - window)
            start_row(r)
            return carry
        lax.fori_loop(window, tl, body, 0)

        def drain(i, carry):
            wait_row(tl - window + i)
            return carry
        lax.fori_loop(0, window, drain, 0)
    else:
        for r in range(tl):
            wait_row(r)

    # ---- (embedding @ W) pre-fused into the table -> +bias -> ReLU ----------
    h = jnp.maximum(gbuf[...] + b_ref[...], 0.0)           # (tl, d_pad) f32
    # TODO(synk): nn.Dropout(p=0.1) treated as identity (inference semantics).

    # ---- positional encoding: streamed (tl, d_pad) tile, plain VPU add ------
    h = h + pe_ref[...]

    # ---- LayerNorm over the d_valid real features (eps = 1e-5) --------------
    d_pad = h.shape[-1]
    inv_d = 1.0 / d_valid
    mean = jnp.sum(h, axis=-1, keepdims=True) * inv_d      # padded lanes are 0
    centered = h - mean
    var_sum = jnp.sum(centered * centered, axis=-1, keepdims=True)
    if d_pad != d_valid:
        # Padded lanes of `centered` are exactly -mean -> analytic correction.
        var_sum = var_sum - float(d_pad - d_valid) * (mean * mean)
    hn = centered * lax.rsqrt(var_sum * inv_d + 1e-5)
    out_ref[...] = (hn * gamma_ref[...] + beta_ref[...]).astype(out_ref.dtype)


def prepare_text_embedding(params):
    """One-time preprocessing (hoisted out of the per-call hot path):
    folds embedding @ W into one (V, d_pad) lookup table and zero-pads every
    d_model-sized constant to a lane-dense multiple of 128."""
    emb, w, b = params["embed"], params["w"], params["b"]
    pe, gamma, beta = params["pe"], params["gamma"], params["beta"]
    D = w.shape[1]
    d_pad = _round_up(D, 128)
    # (onehot @ emb) @ w == onehot @ (emb @ w); bias/ReLU come after, so exact.
    table = _pad_cols(jnp.dot(emb, w).astype(jnp.float32), d_pad)   # (V, d_pad)
    # TODO(synk): a bf16 / u32-packed table would halve gather DMA bytes but
    # needs the 2xbf16->u32 bitcast trick for sublane-safe single-row DMAs.
    return {
        "table": table,
        "pe": _pad_cols(pe, d_pad).astype(jnp.float32),             # (max_len, d_pad)
        "b": _pad_cols(b, d_pad).astype(jnp.float32),
        "gamma": _pad_cols(gamma, d_pad).astype(jnp.float32),
        "beta": _pad_cols(beta, d_pad).astype(jnp.float32),
        "d_model": D,
    }


def text_embedding(sentence, prepared, *, out_dtype=jnp.float32, tl=None):
    B, L = sentence.shape
    table = prepared["table"]                  # (V, d_pad) f32, stays in HBM
    V, d_pad = table.shape
    D = prepared["d_model"]
    if L > prepared["pe"].shape[0]:
        raise ValueError("sequence length exceeds positional-encoding max_len")

    # Sequence tiling: one batch row x one tl-row sequence tile per grid step.
    if tl is None:
        target = _default_row_target()
        n_l = max(1, -(-_round_up(L, 8) // target))
        tl = _round_up(-(-L // n_l), 8)
    else:
        tl = _round_up(max(tl, 8), 8)
        n_l = -(-L // tl)
    L_pad = n_l * tl
    window = max(1, min(4, tl))                # gather DMAs in flight per tile

    # Token ids -> SMEM via scalar prefetch.  Out-of-range ids are clamped
    # (PyTorch nn.Embedding would raise); padded positions gather row 0 and
    # produce rows that are sliced off below.
    ids = jnp.clip(sentence.astype(jnp.int32), 0, V - 1)
    if L_pad != L:
        ids = jnp.pad(ids, ((0, 0), (0, L_pad - L)))

    pe_p = prepared["pe"][:L]
    if L_pad != L:
        pe_p = jnp.pad(pe_p, ((0, L_pad - L), (0, 0)))

    out_itemsize = jnp.dtype(out_dtype).itemsize
    needed = (tl * d_pad * 4                   # gather scratch
              + 2 * tl * d_pad * 4             # double-buffered pe tile
              + 2 * 3 * d_pad * 4              # bias / gamma / beta
              + 2 * tl * d_pad * out_itemsize)  # double-buffered output block
    vmem_limit = int(min(_vmem_ceiling_bytes(),
                         max(needed + (4 << 20), 32 << 20)))

    kernel = functools.partial(text_embedding_kernel, tl=tl, d_valid=D,
                               window=window)
    out = pl.pallas_call(
        kernel,
        out_shape=jax.ShapeDtypeStruct((B, L_pad, d_pad), out_dtype),
        grid_spec=pltpu.PrefetchScalarGridSpec(
            num_scalar_prefetch=1,                       # ids -> SMEM
            grid=(B, n_l),
            in_specs=[
                pl.BlockSpec(memory_space=pl.ANY),       # fused (V, d_pad) table, HBM
                pl.BlockSpec((tl, d_pad), lambda b, j, ids: (j, 0)),   # pe tile
                pl.BlockSpec((1, d_pad), lambda b, j, ids: (0, 0)),    # linear bias
                pl.BlockSpec((1, d_pad), lambda b, j, ids: (0, 0)),    # LN gamma
                pl.BlockSpec((1, d_pad), lambda b, j, ids: (0, 0)),    # LN beta
            ],
            out_specs=pl.BlockSpec((None, tl, d_pad), lambda b, j, ids: (b, j, 0)),
            scratch_shapes=[
                pltpu.VMEM((tl, d_pad), jnp.float32),    # gathered table rows
                pltpu.SemaphoreType.DMA((window,)),
            ],
        ),
        compiler_params=pltpu.CompilerParams(
            dimension_semantics=("parallel", "parallel"),
            vmem_limit_bytes=vmem_limit),
    )(ids, table, pe_p, prepared["b"], prepared["gamma"], prepared["beta"])

    return out[:, :L, :D]


def build_positional_encoding(d_model, max_len):
    position = jnp.arange(max_len, dtype=jnp.float32)[:, None]          # (max_len, 1)
    div_term = jnp.exp(jnp.arange(0, d_model, 2, dtype=jnp.float32)
                       * (-math.log(10000.0) / d_model))                # (d_model/2,)
    pe = jnp.zeros((max_len, d_model), dtype=jnp.float32)
    pe = pe.at[:, 0::2].set(jnp.sin(position * div_term))
    pe = pe.at[:, 1::2].set(jnp.cos(position * div_term))
    return pe


def init_params(key, vocab_size, embed_size, d_model, max_len, padding_idx=0):
    k_emb, k_w, k_b = jax.random.split(key, 3)
    embed = jax.random.normal(k_emb, (vocab_size, embed_size), jnp.float32)
    embed = embed.at[padding_idx].set(0.0)              # nn.Embedding padding_idx row
    bound = 1.0 / math.sqrt(embed_size)
    w = jax.random.uniform(k_w, (embed_size, d_model), jnp.float32, -bound, bound)
    b = jax.random.uniform(k_b, (1, d_model), jnp.float32, -bound, bound)
    pe = build_positional_encoding(d_model, max_len)
    gamma = jnp.ones((1, d_model), jnp.float32)
    beta = jnp.zeros((1, d_model), jnp.float32)
    return {"embed": embed, "w": w, "b": b, "pe": pe,
            "gamma": gamma, "beta": beta}


def reference_forward(sentence, params):
    B, L = sentence.shape
    x = params["embed"][sentence]                       # (B, L, E)
    h = jnp.maximum(x @ params["w"] + params["b"][0], 0.0)
    h = h + params["pe"][:L][None, :, :]
    mean = jnp.mean(h, axis=-1, keepdims=True)
    var = jnp.mean(jnp.square(h - mean), axis=-1, keepdims=True)
    hn = (h - mean) / jnp.sqrt(var + 1e-5)
    return hn * params["gamma"][0] + params["beta"][0]


if __name__ == "__main__":
    key = jax.random.PRNGKey(0)

    # Config 1: small shapes (exercises the default tiling + rolling DMA window).
    vocab_size, embed_size, d_model, max_len = 32, 16, 32, 64
    B, L = 2, 8
    k_params, k_tok, key = jax.random.split(key, 3)
    params = init_params(k_params, vocab_size, embed_size, d_model, max_len)
    sentence = jax.random.randint(k_tok, (B, L), 0, vocab_size, dtype=jnp.int32)
    prepared = prepare_text_embedding(params)

    ref = reference_forward(sentence, params)
    out = jax.block_until_ready(text_embedding(sentence, prepared))
    assert out.shape == (B, L, d_model)
    assert jnp.allclose(out, ref, atol=1e-3, rtol=1e-3), "f32-output kernel mismatch"

    # bf16 output variant (halves the HBM writeback stream).
    out_bf16 = jax.block_until_ready(
        text_embedding(sentence, prepared, out_dtype=jnp.bfloat16))
    assert out_bf16.shape == (B, L, d_model)
    assert jnp.allclose(out_bf16.astype(jnp.float32), ref, atol=3e-2, rtol=3e-2), \
        "bf16-output kernel mismatch"

    # Config 2: non-multiple-of-8 seq length, multi-tile 2-D grid, d_model != 128.
    vocab_size2, embed_size2, d_model2, max_len2 = 50, 24, 96, 64
    B2, L2 = 3, 20
    k_params2, k_tok2, key = jax.random.split(key, 3)
    params2 = init_params(k_params2, vocab_size2, embed_size2, d_model2, max_len2)
    sentence2 = jax.random.randint(k_tok2, (B2, L2), 0, vocab_size2, dtype=jnp.int32)
    prepared2 = prepare_text_embedding(params2)
    ref2 = reference_forward(sentence2, params2)
    out2 = jax.block_until_ready(text_embedding(sentence2, prepared2, tl=16))
    assert out2.shape == (B2, L2, d_model2)
    assert jnp.allclose(out2, ref2, atol=1e-3, rtol=1e-3), "config-2 kernel mismatch"

    print("KERNEL_OK")
</pallas_src>

<mosaic_0001>
module attributes {stable_mosaic.version = 11 : i64} {
  func.func @text_embedding_kernel(%arg0: i32, %arg1: i32, %arg2: memref<2x8xi32, #tpu.memory_space<smem>>, %arg3: memref<32x128xf32, #tpu.memory_space<any>>, %arg4: memref<8x128xf32, #tpu.memory_space<vmem>>, %arg5: memref<1x128xf32, #tpu.memory_space<vmem>>, %arg6: memref<1x128xf32, #tpu.memory_space<vmem>>, %arg7: memref<1x128xf32, #tpu.memory_space<vmem>>, %arg8: memref<1x8x128xf32, #tpu.memory_space<vmem>>, %arg9: memref<8x128xf32, #tpu.memory_space<vmem>>, %arg10: memref<4x!tpu.dma_semaphore, #tpu.memory_space<semaphore_mem>>) attributes {dimension_semantics = [#tpu.dimension_semantics<parallel>, #tpu.dimension_semantics<parallel>], iteration_bounds = array<i64: 2, 1>, scalar_prefetch = 1 : i64, scratch_operands = 2 : i64, tpu.core_type = #tpu.core_type<tc>, window_params = [{}, {transform_indices = @transform_1, window_bounds = array<i64: 8, 128>}, {pipeline_mode = #tpu.pipeline_mode<synchronous>, transform_indices = @transform_2, window_bounds = array<i64: 1, 128>}, {pipeline_mode = #tpu.pipeline_mode<synchronous>, transform_indices = @transform_3, window_bounds = array<i64: 1, 128>}, {pipeline_mode = #tpu.pipeline_mode<synchronous>, transform_indices = @transform_4, window_bounds = array<i64: 1, 128>}, {transform_indices = @transform_5, window_bounds = array<i64: 1, 8, 128>}]} {
    %c8_i32 = arith.constant 8 : i32
    %0 = arith.muli %arg1, %c8_i32 : i32
    %c0_i32 = arith.constant 0 : i32
    %1 = arith.addi %0, %c0_i32 : i32
    %2 = arith.index_cast %arg0 : i32 to index
    %3 = arith.index_cast %1 : i32 to index
    %4 = memref.load %arg2[%2, %3] : memref<2x8xi32, #tpu.memory_space<smem>>
    %c0_i32_0 = arith.constant 0 : i32
    %c0_i32_1 = arith.constant 0 : i32
    %5 = tpu.memref_slice %arg3[%4, %c0_i32_1] : memref<32x128xf32, #tpu.memory_space<any>> -> memref<1x128xf32, #tpu.memory_space<any>>
    %c0_i32_2 = arith.constant 0 : i32
    %c0_i32_3 = arith.constant 0 : i32
    %6 = tpu.memref_slice %arg9[%c0_i32_2, %c0_i32_3] : memref<8x128xf32, #tpu.memory_space<vmem>> -> memref<1x128xf32, #tpu.memory_space<vmem>>
    %7 = tpu.memref_slice %arg10[%c0_i32_0] : memref<4x!tpu.dma_semaphore, #tpu.memory_space<semaphore_mem>> -> memref<1x!tpu.dma_semaphore, #tpu.memory_space<semaphore_mem>>
    %8 = tpu.memref_squeeze %7 : memref<1x!tpu.dma_semaphore, #tpu.memory_space<semaphore_mem>> -> memref<!tpu.dma_semaphore, #tpu.memory_space<semaphore_mem>>
    tpu.enqueue_dma source(%5 : memref<1x128xf32, #tpu.memory_space<any>>) target(%6 : memref<1x128xf32, #tpu.memory_space<vmem>>) target_semaphore(%8 : memref<!tpu.dma_semaphore, #tpu.memory_space<semaphore_mem>>)
    %c1_i32 = arith.constant 1 : i32
    %9 = arith.addi %0, %c1_i32 : i32
    %10 = arith.index_cast %arg0 : i32 to index
    %11 = arith.index_cast %9 : i32 to index
    %12 = memref.load %arg2[%10, %11] : memref<2x8xi32, #tpu.memory_space<smem>>
    %c1_i32_4 = arith.constant 1 : i32
    %c0_i32_5 = arith.constant 0 : i32
    %13 = tpu.memref_slice %arg3[%12, %c0_i32_5] : memref<32x128xf32, #tpu.memory_space<any>> -> memref<1x128xf32, #tpu.memory_space<any>>
    %c1_i32_6 = arith.constant 1 : i32
    %c0_i32_7 = arith.constant 0 : i32
    %14 = tpu.memref_slice %arg9[%c1_i32_6, %c0_i32_7] : memref<8x128xf32, #tpu.memory_space<vmem>> -> memref<1x128xf32, #tpu.memory_space<vmem>>
    %15 = tpu.memref_slice %arg10[%c1_i32_4] : memref<4x!tpu.dma_semaphore, #tpu.memory_space<semaphore_mem>> -> memref<1x!tpu.dma_semaphore, #tpu.memory_space<semaphore_mem>>
    %16 = tpu.memref_squeeze %15 : memref<1x!tpu.dma_semaphore, #tpu.memory_space<semaphore_mem>> -> memref<!tpu.dma_semaphore, #tpu.memory_space<semaphore_mem>>
    tpu.enqueue_dma source(%13 : memref<1x128xf32, #tpu.memory_space<any>>) target(%14 : memref<1x128xf32, #tpu.memory_space<vmem>>) target_semaphore(%16 : memref<!tpu.dma_semaphore, #tpu.memory_space<semaphore_mem>>)
    %c2_i32 = arith.constant 2 : i32
    %17 = arith.addi %0, %c2_i32 : i32
    %18 = arith.index_cast %arg0 : i32 to index
    %19 = arith.index_cast %17 : i32 to index
    %20 = memref.load %arg2[%18, %19] : memref<2x8xi32, #tpu.memory_space<smem>>
    %c2_i32_8 = arith.constant 2 : i32
    %c0_i32_9 = arith.constant 0 : i32
    %21 = tpu.memref_slice %arg3[%20, %c0_i32_9] : memref<32x128xf32, #tpu.memory_space<any>> -> memref<1x128xf32, #tpu.memory_space<any>>
    %c2_i32_10 = arith.constant 2 : i32
    %c0_i32_11 = arith.constant 0 : i32
    %22 = tpu.memref_slice %arg9[%c2_i32_10, %c0_i32_11] : memref<8x128xf32, #tpu.memory_space<vmem>> -> memref<1x128xf32, #tpu.memory_space<vmem>>
    %23 = tpu.memref_slice %arg10[%c2_i32_8] : memref<4x!tpu.dma_semaphore, #tpu.memory_space<semaphore_mem>> -> memref<1x!tpu.dma_semaphore, #tpu.memory_space<semaphore_mem>>
    %24 = tpu.memref_squeeze %23 : memref<1x!tpu.dma_semaphore, #tpu.memory_space<semaphore_mem>> -> memref<!tpu.dma_semaphore, #tpu.memory_space<semaphore_mem>>
    tpu.enqueue_dma source(%21 : memref<1x128xf32, #tpu.memory_space<any>>) target(%22 : memref<1x128xf32, #tpu.memory_space<vmem>>) target_semaphore(%24 : memref<!tpu.dma_semaphore, #tpu.memory_space<semaphore_mem>>)
    %c3_i32 = arith.constant 3 : i32
    %25 = arith.addi %0, %c3_i32 : i32
    %26 = arith.index_cast %arg0 : i32 to index
    %27 = arith.index_cast %25 : i32 to index
    %28 = memref.load %arg2[%26, %27] : memref<2x8xi32, #tpu.memory_space<smem>>
    %c3_i32_12 = arith.constant 3 : i32
    %c0_i32_13 = arith.constant 0 : i32
    %29 = tpu.memref_slice %arg3[%28, %c0_i32_13] : memref<32x128xf32, #tpu.memory_space<any>> -> memref<1x128xf32, #tpu.memory_space<any>>
    %c3_i32_14 = arith.constant 3 : i32
    %c0_i32_15 = arith.constant 0 : i32
    %30 = tpu.memref_slice %arg9[%c3_i32_14, %c0_i32_15] : memref<8x128xf32, #tpu.memory_space<vmem>> -> memref<1x128xf32, #tpu.memory_space<vmem>>
    %31 = tpu.memref_slice %arg10[%c3_i32_12] : memref<4x!tpu.dma_semaphore, #tpu.memory_space<semaphore_mem>> -> memref<1x!tpu.dma_semaphore, #tpu.memory_space<semaphore_mem>>
    %32 = tpu.memref_squeeze %31 : memref<1x!tpu.dma_semaphore, #tpu.memory_space<semaphore_mem>> -> memref<!tpu.dma_semaphore, #tpu.memory_space<semaphore_mem>>
    tpu.enqueue_dma source(%29 : memref<1x128xf32, #tpu.memory_space<any>>) target(%30 : memref<1x128xf32, #tpu.memory_space<vmem>>) target_semaphore(%32 : memref<!tpu.dma_semaphore, #tpu.memory_space<semaphore_mem>>)
    %c4_i32 = arith.constant 4 : i32
    %c4_i32_16 = arith.constant 4 : i32
    %33 = arith.addi %c4_i32, %c4_i32_16 : i32
    %c1_i32_17 = arith.constant 1 : i32
    scf.for %arg11 = %c4_i32 to %33 step %c1_i32_17  : i32 {
      %c4_i32_41 = arith.constant 4 : i32
      %72 = arith.subi %arg11, %c4_i32_41 : i32
      %c4_i32_42 = arith.constant 4 : i32
      %c0_i32_43 = arith.constant 0 : i32
      %73 = arith.cmpi eq, %c4_i32_42, %c0_i32_43 : i32
      %c1_i32_44 = arith.constant 1 : i32
      %74 = arith.select %73, %c1_i32_44, %c4_i32_42 : i32
      %75 = arith.remsi %72, %74 : i32
      %c0_i32_45 = arith.constant 0 : i32
      %76 = arith.cmpi ne, %75, %c0_i32_45 : i32
      %c0_i32_46 = arith.constant 0 : i32
      %77 = arith.cmpi slt, %75, %c0_i32_46 : i32
      %c0_i32_47 = arith.constant 0 : i32
      %78 = arith.cmpi slt, %74, %c0_i32_47 : i32
      %79 = arith.xori %77, %78 : i1
      %80 = arith.andi %79, %76 : i1
      %81 = arith.addi %75, %74 : i32
      %82 = arith.select %80, %81, %75 : i32
      %c0_i32_48 = arith.constant 0 : i32
      %c0_i32_49 = arith.constant 0 : i32
      %83 = tpu.memref_slice %arg3[%c0_i32_48, %c0_i32_49] : memref<32x128xf32, #tpu.memory_space<any>> -> memref<1x128xf32, #tpu.memory_space<any>>
      %c0_i32_50 = arith.constant 0 : i32
      %84 = tpu.memref_slice %arg9[%72, %c0_i32_50] : memref<8x128xf32, #tpu.memory_space<vmem>> -> memref<1x128xf32, #tpu.memory_space<vmem>>
      %85 = tpu.memref_slice %arg10[%82] : memref<4x!tpu.dma_semaphore, #tpu.memory_space<semaphore_mem>> -> memref<1x!tpu.dma_semaphore, #tpu.memory_space<semaphore_mem>>
      %86 = tpu.memref_squeeze %85 : memref<1x!tpu.dma_semaphore, #tpu.memory_space<semaphore_mem>> -> memref<!tpu.dma_semaphore, #tpu.memory_space<semaphore_mem>>
      tpu.wait_dma2 semaphore(%86 : memref<!tpu.dma_semaphore, #tpu.memory_space<semaphore_mem>>) src(%83 : memref<1x128xf32, #tpu.memory_space<any>>) dst(%84 : memref<1x128xf32, #tpu.memory_space<vmem>>)
      %87 = arith.addi %0, %arg11 : i32
      %88 = arith.index_cast %arg0 : i32 to index
      %89 = arith.index_cast %87 : i32 to index
      %90 = memref.load %arg2[%88, %89] : memref<2x8xi32, #tpu.memory_space<smem>>
      %c4_i32_51 = arith.constant 4 : i32
      %c0_i32_52 = arith.constant 0 : i32
      %91 = arith.cmpi eq, %c4_i32_51, %c0_i32_52 : i32
      %c1_i32_53 = arith.constant 1 : i32
      %92 = arith.select %91, %c1_i32_53, %c4_i32_51 : i32
      %93 = arith.remsi %arg11, %92 : i32
      %c0_i32_54 = arith.constant 0 : i32
      %94 = arith.cmpi ne, %93, %c0_i32_54 : i32
      %c0_i32_55 = arith.constant 0 : i32
      %95 = arith.cmpi slt, %93, %c0_i32_55 : i32
      %c0_i32_56 = arith.constant 0 : i32
      %96 = arith.cmpi slt, %92, %c0_i32_56 : i32
      %97 = arith.xori %95, %96 : i1
      %98 = arith.andi %97, %94 : i1
      %99 = arith.addi %93, %92 : i32
      %100 = arith.select %98, %99, %93 : i32
      %c0_i32_57 = arith.constant 0 : i32
      %101 = tpu.memref_slice %arg3[%90, %c0_i32_57] : memref<32x128xf32, #tpu.memory_space<any>> -> memref<1x128xf32, #tpu.memory_space<any>>
      %c0_i32_58 = arith.constant 0 : i32
      %102 = tpu.memref_slice %arg9[%arg11, %c0_i32_58] : memref<8x128xf32, #tpu.memory_space<vmem>> -> memref<1x128xf32, #tpu.memory_space<vmem>>
      %103 = tpu.memref_slice %arg10[%100] : memref<4x!tpu.dma_semaphore, #tpu.memory_space<semaphore_mem>> -> memref<1x!tpu.dma_semaphore, #tpu.memory_space<semaphore_mem>>
      %104 = tpu.memref_squeeze %103 : memref<1x!tpu.dma_semaphore, #tpu.memory_space<semaphore_mem>> -> memref<!tpu.dma_semaphore, #tpu.memory_space<semaphore_mem>>
      tpu.enqueue_dma source(%101 : memref<1x128xf32, #tpu.memory_space<any>>) target(%102 : memref<1x128xf32, #tpu.memory_space<vmem>>) target_semaphore(%104 : memref<!tpu.dma_semaphore, #tpu.memory_space<semaphore_mem>>)
    }
    %c4_i32_18 = arith.constant 4 : i32
    %c0_i32_19 = arith.constant 0 : i32
    %c4_i32_20 = arith.constant 4 : i32
    %34 = arith.addi %c0_i32_19, %c4_i32_20 : i32
    %c1_i32_21 = arith.constant 1 : i32
    scf.for %arg11 = %c0_i32_19 to %34 step %c1_i32_21  : i32 {
      %c4_i32_41 = arith.constant 4 : i32
      %72 = arith.addi %c4_i32_41, %arg11 : i32
      %c4_i32_42 = arith.constant 4 : i32
      %c0_i32_43 = arith.constant 0 : i32
      %73 = arith.cmpi eq, %c4_i32_42, %c0_i32_43 : i32
      %c1_i32_44 = arith.constant 1 : i32
      %74 = arith.select %73, %c1_i32_44, %c4_i32_42 : i32
      %75 = arith.remsi %72, %74 : i32
      %c0_i32_45 = arith.constant 0 : i32
      %76 = arith.cmpi ne, %75, %c0_i32_45 : i32
      %c0_i32_46 = arith.constant 0 : i32
      %77 = arith.cmpi slt, %75, %c0_i32_46 : i32
      %c0_i32_47 = arith.constant 0 : i32
      %78 = arith.cmpi slt, %74, %c0_i32_47 : i32
      %79 = arith.xori %77, %78 : i1
      %80 = arith.andi %79, %76 : i1
      %81 = arith.addi %75, %74 : i32
      %82 = arith.select %80, %81, %75 : i32
      %c0_i32_48 = arith.constant 0 : i32
      %c0_i32_49 = arith.constant 0 : i32
      %83 = tpu.memref_slice %arg3[%c0_i32_48, %c0_i32_49] : memref<32x128xf32, #tpu.memory_space<any>> -> memref<1x128xf32, #tpu.memory_space<any>>
      %c0_i32_50 = arith.constant 0 : i32
      %84 = tpu.memref_slice %arg9[%72, %c0_i32_50] : memref<8x128xf32, #tpu.memory_space<vmem>> -> memref<1x128xf32, #tpu.memory_space<vmem>>
      %85 = tpu.memref_slice %arg10[%82] : memref<4x!tpu.dma_semaphore, #tpu.memory_space<semaphore_mem>> -> memref<1x!tpu.dma_semaphore, #tpu.memory_space<semaphore_mem>>
      %86 = tpu.memref_squeeze %85 : memref<1x!tpu.dma_semaphore, #tpu.memory_space<semaphore_mem>> -> memref<!tpu.dma_semaphore, #tpu.memory_space<semaphore_mem>>
      tpu.wait_dma2 semaphore(%86 : memref<!tpu.dma_semaphore, #tpu.memory_space<semaphore_mem>>) src(%83 : memref<1x128xf32, #tpu.memory_space<any>>) dst(%84 : memref<1x128xf32, #tpu.memory_space<vmem>>)
    }
    %c4_i32_22 = arith.constant 4 : i32
    %c0 = arith.constant 0 : index
    %c0_23 = arith.constant 0 : index
    %35 = vector.load %arg9[%c0, %c0_23] : memref<8x128xf32, #tpu.memory_space<vmem>>, vector<8x128xf32>
    %c0_24 = arith.constant 0 : index
    %c0_25 = arith.constant 0 : index
    %36 = vector.load %arg5[%c0_24, %c0_25] : memref<1x128xf32, #tpu.memory_space<vmem>>, vector<1x128xf32>
    %37 = vector.broadcast %36 : vector<1x128xf32> to vector<8x128xf32>
    %38 = arith.addf %35, %37 : vector<8x128xf32>
    %cst = arith.constant 0.000000e+00 : f32
    %39 = vector.broadcast %cst : f32 to vector<8x128xf32>
    %40 = arith.maximumf %38, %39 : vector<8x128xf32>
    %c0_26 = arith.constant 0 : index
    %c0_27 = arith.constant 0 : index
    %41 = vector.load %arg4[%c0_26, %c0_27] : memref<8x128xf32, #tpu.memory_space<vmem>>, vector<8x128xf32>
    %42 = arith.addf %40, %41 : vector<8x128xf32>
    %cst_28 = arith.constant dense<0.000000e+00> : vector<8xf32>
    %43 = vector.multi_reduction <add>, %42, %cst_28 [1] : vector<8x128xf32> to vector<8xf32>
    %44 = vector.shape_cast %43 : vector<8xf32> to vector<8x1xf32>
    %cst_29 = arith.constant 3.125000e-02 : f32
    %45 = vector.broadcast %cst_29 : f32 to vector<8x1xf32>
    %46 = arith.mulf %44, %45 : vector<8x1xf32>
    %47 = vector.broadcast %46 : vector<8x1xf32> to vector<8x128xf32>
    %48 = arith.subf %42, %47 : vector<8x128xf32>
    %49 = arith.mulf %48, %48 : vector<8x128xf32>
    %cst_30 = arith.constant dense<0.000000e+00> : vector<8xf32>
    %50 = vector.multi_reduction <add>, %49, %cst_30 [1] : vector<8x128xf32> to vector<8xf32>
    %51 = vector.shape_cast %50 : vector<8xf32> to vector<8x1xf32>
    %52 = arith.mulf %46, %46 : vector<8x1xf32>
    %cst_31 = arith.constant 9.600000e+01 : f32
    %53 = vector.broadcast %cst_31 : f32 to vector<8x1xf32>
    %54 = arith.mulf %53, %52 : vector<8x1xf32>
    %55 = arith.subf %51, %54 : vector<8x1xf32>
    %cst_32 = arith.constant 3.125000e-02 : f32
    %56 = vector.broadcast %cst_32 : f32 to vector<8x1xf32>
    %57 = arith.mulf %55, %56 : vector<8x1xf32>
    %cst_33 = arith.constant 9.99999974E-6 : f32
    %58 = vector.broadcast %cst_33 : f32 to vector<8x1xf32>
    %59 = arith.addf %57, %58 : vector<8x1xf32>
    %60 = math.rsqrt %59 : vector<8x1xf32>
    %61 = vector.broadcast %60 : vector<8x1xf32> to vector<8x128xf32>
    %62 = arith.mulf %48, %61 : vector<8x128xf32>
    %c0_34 = arith.constant 0 : index
    %c0_35 = arith.constant 0 : index
    %63 = vector.load %arg6[%c0_34, %c0_35] : memref<1x128xf32, #tpu.memory_space<vmem>>, vector<1x128xf32>
    %64 = vector.broadcast %63 : vector<1x128xf32> to vector<8x128xf32>
    %65 = arith.mulf %62, %64 : vector<8x128xf32>
    %c0_36 = arith.constant 0 : index
    %c0_37 = arith.constant 0 : index
    %66 = vector.load %arg7[%c0_36, %c0_37] : memref<1x128xf32, #tpu.memory_space<vmem>>, vector<1x128xf32>
    %67 = vector.broadcast %66 : vector<1x128xf32> to vector<8x128xf32>
    %68 = arith.addf %65, %67 : vector<8x128xf32>
    %c0_38 = arith.constant 0 : index
    %c0_39 = arith.constant 0 : index
    %c0_40 = arith.constant 0 : index
    %69 = vector.load %arg8[%c0_38, %c0_39, %c0_40] : memref<1x8x128xf32, #tpu.memory_space<vmem>>, vector<1x8x128xf32>
    %70 = vector.shape_cast %69 : vector<1x8x128xf32> to vector<8x128xf32>
    %71 = vector.shape_cast %68 : vector<8x128xf32> to vector<1x8x128xf32>
    tpu.vector_store %arg8[%c0_38, %c0_39, %c0_40], %71 {strides = array<i32>} : memref<1x8x128xf32, #tpu.memory_space<vmem>>, vector<1x8x128xf32>,
    return
  }
  func.func @transform_1(%arg0: i32, %arg1: i32, %arg2: memref<2x8xi32, #tpu.memory_space<smem>>) -> (i32, i32) {
    %c0_i32 = arith.constant 0 : i32
    %c0_i32_0 = arith.constant 0 : i32
    return %arg1, %c0_i32 : i32, i32
  }
  func.func @transform_2(%arg0: i32, %arg1: i32, %arg2: memref<2x8xi32, #tpu.memory_space<smem>>) -> (i32, i32) {
    %c0_i32 = arith.constant 0 : i32
    %c0_i32_0 = arith.constant 0 : i32
    %c0_i32_1 = arith.constant 0 : i32
    return %c0_i32, %c0_i32_0 : i32, i32
  }
  func.func @transform_3(%arg0: i32, %arg1: i32, %arg2: memref<2x8xi32, #tpu.memory_space<smem>>) -> (i32, i32) {
    %c0_i32 = arith.constant 0 : i32
    %c0_i32_0 = arith.constant 0 : i32
    %c0_i32_1 = arith.constant 0 : i32
    return %c0_i32, %c0_i32_0 : i32, i32
  }
  func.func @transform_4(%arg0: i32, %arg1: i32, %arg2: memref<2x8xi32, #tpu.memory_space<smem>>) -> (i32, i32) {
    %c0_i32 = arith.constant 0 : i32
    %c0_i32_0 = arith.constant 0 : i32
    %c0_i32_1 = arith.constant 0 : i32
    return %c0_i32, %c0_i32_0 : i32, i32
  }
  func.func @transform_5(%arg0: i32, %arg1: i32, %arg2: memref<2x8xi32, #tpu.memory_space<smem>>) -> (i32, i32, i32) {
    %c0_i32 = arith.constant 0 : i32
    %c0_i32_0 = arith.constant 0 : i32
    return %arg0, %arg1, %c0_i32 : i32, i32, i32
  }
}

</mosaic_0001>

<llo_original>
// kernel: tpu_custom_call.1
$region0: #{tpu_custom_call.1}
  #allocation0 [shape = 'u32[]', space=smem, size = 0x4, offset = 0x4, fixed_abs, tag = 'smem constant byte address 0x4 - core index']
  #allocation1 [shape = 'u32[72,128]{1,0:T(1,128)}', space=vmem, size = 0x9000, scoped, tag = 'internal scratch']
  #allocation2 [shape = 'f32[8,128]{1,0:T(8,128)}', space=vmem, size = 0x1000, scoped, tag = 'scratch operand']
  #allocation3 [shape = 's32[4]{0}', space=sflag, size = 0x10, scoped, tag = 'scratch operand']
  #allocation4 [shape = 's32[1]{0}', space=sflag, size = 0x4, scoped, tag = 'scoped memory for tpu_custom_call.1']
  #allocation5 [shape = 'u8[1024]{0}', space=smem, size = 0x400, scoped, tag = 'prefetched SMEM operand 0']
  #allocation10 [shape = 's32[]', space=sflag, size = 0x4, offset = 0, fixed_abs, tag = 'sflag constant byte address 0x0 - dummy sync flag']
  #allocation11 [shape = 's32[]', space=sflag, size = 0x4, offset = 0, fixed_abs, tag = 'sflag constant byte address 0x0 - dummy sync flag']
  #allocation12 [shape = 'u32[]', space=smem, size = 0x4, offset = 0x44, fixed_abs, tag = 'smem constant byte address 0x44 - assertion arg 0']
  #allocation13 [shape = 'u32[]', space=smem, size = 0x4, offset = 0x48, fixed_abs, tag = 'smem constant byte address 0x48 - assertion arg 1']
  #allocation14 [shape = 's32[]', space=sflag, size = 0x4, offset = 0, fixed_abs, tag = 'sflag constant byte address 0x0 - dummy sync flag']
  #allocation15 [shape = 's32[]', space=sflag, size = 0x4, offset = 0, fixed_abs, tag = 'sflag constant byte address 0x0 - dummy sync flag']
  #allocation16 [shape = 's32[]', space=sflag, size = 0x4, offset = 0, fixed_abs, tag = 'sflag constant byte address 0x0 - dummy sync flag']
  #allocation17 [shape = 's32[]', space=sflag, size = 0x4, offset = 0, fixed_abs, tag = 'sflag constant byte address 0x0 - dummy sync flag']
  #allocation18 [shape = 's32[]', space=sflag, size = 0x4, offset = 0, fixed_abs, tag = 'sflag constant byte address 0x0 - dummy sync flag']
  #allocation19 [shape = 's32[]', space=sflag, size = 0x4, offset = 0, fixed_abs, tag = 'sflag constant byte address 0x0 - dummy sync flag']
  #allocation20 [shape = 's32[]', space=sflag, size = 0x4, offset = 0, fixed_abs, tag = 'sflag constant byte address 0x0 - dummy sync flag']
  #allocation21 [shape = 's32[]', space=sflag, size = 0x4, offset = 0, fixed_abs, tag = 'sflag constant byte address 0x0 - dummy sync flag']
  %s0 = inlined_call_operand.hbm [shape: s32[2,8], index: 0, kind: input, shape index: {}]
  %s1 = inlined_call_operand.hbm [shape: f32[32,128], index: 1, kind: input, shape index: {}]
  %s2 = inlined_call_operand.hbm [shape: f32[8,128], index: 2, kind: input, shape index: {}]
  %s3 = inlined_call_operand.vmem [shape: f32[1,128], index: 3, kind: input, shape index: {}]
  %s4 = inlined_call_operand.vmem [shape: f32[1,128], index: 4, kind: input, shape index: {}]
  %s5 = inlined_call_operand.vmem [shape: f32[1,128], index: 5, kind: input, shape index: {}]
  %s6 = inlined_call_operand.hbm [shape: f32[2,8,128], index: 6, kind: output, shape index: {}]
  %s7 = sld [smem:[#allocation0]]
  $region87: #{tpu_custom_call.1} parent=0
    _
  %s9 = ssub.s32 1, %s7
  %s10 = scalar_select 0, %s9, %s7
  %s12 = sshll.u32 %s0, 4
  %s13 = int_to_ptr.hbm [resolvable:$true] %s12
  %15 = dma.hbm_to_smem %s13, 32, [#allocation5], [#allocation4]
  %17 = dma.done [#allocation4], 32
  %18 = sfence
  $region1: #{tpu_custom_call.1} parent=0
    #allocation6 [shape = 'u8[4096]{0}', space=vmem, size = 0x1000, scoped, tag = 'input window, operand 2, single buffered']
    #allocation7 [shape = 's32[2]{0}', space=sflag, size = 0x8, scoped, tag = 'scoped memory for tpu_custom_call.1']
    #allocation8 [shape = 's32[2]{0}', space=sflag, size = 0x8, scoped, tag = 'scoped memory for tpu_custom_call.1']
    #allocation9 [shape = 'u8[8192]{0}', space=vmem, size = 0x2000, scoped, tag = 'output window, operand 0']
    %19 = vsyncpa [#allocation7], 0
    %20 = vsyncpa [#allocation8], 0
    %s21 = scalar_lea.sflag [#allocation8], 1
    %22 = vsyncpa %s21, 0
    loop: start=0, step=1, limit=4
    $region2: #{tpu_custom_call.1} parent=1 // loop_pre_header
      _
    $region3: #{tpu_custom_call.1} parent=1 // loop_header
      %s24 = sphi 0, %s28
      %p25 = scmp.ge.s32.totalorder %s24, 4
      %s31 = sphi 0, %s43
      %s32 = sphi 0, %s39
      %s33 = sphi 0, %s31
      %s34 = sphi 0, %s32
      %s35 = sphi 0, %s33
      %s36 = sphi 0, %s34
      %s46 = sphi 0, %s48
      %s49 = sphi 0, %s46
      %s50 = sphi 0, %s49
      %s66 = sphi 0, %s50
      %s70 = sphi 0, %s70
      %s72 = sphi 0, %s70
      %s73 = sphi 0, %s72
      %s87 = sphi 0, %s73
      %s91 = sphi 0, %s91
      %s93 = sphi 0, %s91
      %s94 = sphi 0, %s93
      %s108 = sphi 0, %s94
      %s112 = sphi 0, %s112
      %s114 = sphi 0, %s112
      %s115 = sphi 0, %s114
      %s129 = sphi 0, %s115
      %s137 = sphi 0, %s139
      %s140 = sphi 0, %s137
      %s141 = sphi 0, %s140
      %s157 = sphi 0, %s141
    $region4: #{tpu_custom_call.1} parent=1 // loop_header_branch
      %27 = sbr.rel (%p25) target = $region8
    $region5: #{tpu_custom_call.1} parent=1 // loop_body
      %s29 = ssub.s32 %s24, 1
      %s30 = ssub.s32 %s24, 2
      %s37 = sadd.s32 1, %s32
      %p38 = scmp.ge.s32.totalorder %s37, 1
      %s39 = scalar_select %p38, 0, %s37
      %s40 = sadd.s32 1, %s31
      %s41 = scalar_select %p38, %s40, %s31
      %p42 = scmp.ge.s32.totalorder %s41, 2
      %s43 = scalar_select %p42, 0, %s41
      %s44 = ssub.s32 %s32, %s39
      %p45 = scmp.eq.s32.totalorder %s44, 0
      %s47 = sadd.s32 %s46, 1
      %s48 = scalar_select %p45, %s46, %s47
      %p51 = pneg %p45
      %p52 = scmp.eq.s32.totalorder %s24, 1
      %p53 = por %p51, %p52
      %p54 = scmp.ne.s32.totalorder %s46, %s49
      %p55 = scmp.eq.s32.totalorder %s24, 0
      %p56 = por %p54, %p55
      %p57 = scmp.ne.s32.totalorder %s46, %s49
      %p58 = scmp.eq.s32.totalorder %s29, 1
      %p59 = por %p57, %p58
      %p60 = scmp.ne.s32.totalorder %s49, %s50
      %p61 = scmp.eq.s32.totalorder %s29, 0
      %p62 = por %p60, %p61
      %p63 = scmp.ne.s32.totalorder %s49, %s50
      %p64 = scmp.eq.s32.totalorder %s30, 1
      %p65 = por %p63, %p64
      %p67 = scmp.ne.s32.totalorder %s50, %s66
      %p68 = scmp.eq.s32.totalorder %s30, 0
      %p69 = por %p67, %p68
      %s71 = sadd.s32 %s70, 1
      %p74 = scmp.eq.s32.totalorder %s24, 1
      %p75 = scmp.ne.s32.totalorder %s70, %s72
      %p76 = scmp.eq.s32.totalorder %s24, 0
      %p77 = por %p75, %p76
      %p78 = scmp.ne.s32.totalorder %s70, %s72
      %p79 = scmp.eq.s32.totalorder %s29, 1
      %p80 = por %p78, %p79
      %p81 = scmp.ne.s32.totalorder %s72, %s73
      %p82 = scmp.eq.s32.totalorder %s29, 0
      %p83 = por %p81, %p82
      %p84 = scmp.ne.s32.totalorder %s72, %s73
      %p85 = scmp.eq.s32.totalorder %s30, 1
      %p86 = por %p84, %p85
      %p88 = scmp.ne.s32.totalorder %s73, %s87
      %p89 = scmp.eq.s32.totalorder %s30, 0
      %p90 = por %p88, %p89
      %s92 = sadd.s32 %s91, 1
      %p95 = scmp.eq.s32.totalorder %s24, 1
      %p96 = scmp.ne.s32.totalorder %s91, %s93
      %p97 = scmp.eq.s32.totalorder %s24, 0
      %p98 = por %p96, %p97
      %p99 = scmp.ne.s32.totalorder %s91, %s93
      %p100 = scmp.eq.s32.totalorder %s29, 1
      %p101 = por %p99, %p100
      %p102 = scmp.ne.s32.totalorder %s93, %s94
      %p103 = scmp.eq.s32.totalorder %s29, 0
      %p104 = por %p102, %p103
      %p105 = scmp.ne.s32.totalorder %s93, %s94
      %p106 = scmp.eq.s32.totalorder %s30, 1
      %p107 = por %p105, %p106
      %p109 = scmp.ne.s32.totalorder %s94, %s108
      %p110 = scmp.eq.s32.totalorder %s30, 0
      %p111 = por %p109, %p110
      %s113 = sadd.s32 %s112, 1
      %p116 = scmp.eq.s32.totalorder %s24, 1
      %p117 = scmp.ne.s32.totalorder %s112, %s114
      %p118 = scmp.eq.s32.totalorder %s24, 0
      %p119 = por %p117, %p118
      %p120 = scmp.ne.s32.totalorder %s112, %s114
      %p121 = scmp.eq.s32.totalorder %s29, 1
      %p122 = por %p120, %p121
      %p123 = scmp.ne.s32.totalorder %s114, %s115
      %p124 = scmp.eq.s32.totalorder %s29, 0
      %p125 = por %p123, %p124
      %p126 = scmp.ne.s32.totalorder %s114, %s115
      %p127 = scmp.eq.s32.totalorder %s30, 1
      %p128 = por %p126, %p127
      %p130 = scmp.ne.s32.totalorder %s115, %s129
      %p131 = scmp.eq.s32.totalorder %s30, 0
      %p132 = por %p130, %p131
      %s133 = ssub.s32 %s31, %s43
      %s134 = ssub.s32 %s32, %s39
      %s135 = sor.u32 %s133, %s134
      %p136 = scmp.eq.s32.totalorder %s135, 0
      %s138 = sadd.s32 %s137, 1
      %s139 = scalar_select %p136, %s137, %s138
      %p142 = pneg %p136
      %p143 = scmp.eq.s32.totalorder %s24, 1
      %p144 = por %p142, %p143
      %p145 = scmp.ne.s32.totalorder %s137, %s140
      %p146 = scmp.eq.s32.totalorder %s24, 0
      %p147 = por %p145, %p146
      %p148 = scmp.ne.s32.totalorder %s137, %s140
      %p149 = scmp.eq.s32.totalorder %s29, 1
      %p150 = por %p148, %p149
      %p151 = scmp.ne.s32.totalorder %s140, %s141
      %p152 = scmp.eq.s32.totalorder %s29, 0
      %p153 = por %p151, %p152
      %p154 = scmp.ne.s32.totalorder %s140, %s141
      %p155 = scmp.eq.s32.totalorder %s30, 1
      %p156 = por %p154, %p155
      %p158 = scmp.ne.s32.totalorder %s141, %s157
      %p159 = scmp.eq.s32.totalorder %s30, 0
      %p160 = por %p158, %p159
      %p161 = scmp.le.s32.totalorder 1, %s24
      %p162 = scmp.lt.s32.totalorder %s24, 3
      %p163 = pnand %p161, %p162
      %p164 = pneg %p163
      // Predicated region
      $region9: #{tpu_custom_call.1} parent=5 // pred_check
        _
      $region10: #{tpu_custom_call.1} parent=5 // pred_check_branch
        %166 = sbr.rel (%p163) target = $region12
      $region11: #{tpu_custom_call.1} parent=5 // pred_region
        %s167 = ssub.s32 %s24, 1
        // Predicated region
        $region13: #{tpu_custom_call.1} parent=11 // pred_check
          %p168 = pneg %p62
        $region14: #{tpu_custom_call.1} parent=11 // pred_check_branch
          %170 = sbr.rel (%p168) target = $region16
        $region15: #{tpu_custom_call.1} parent=11 // pred_region
          %172 = vsyncadd [#allocation7], 0
          %s173 = smul.addr %s34, 8
          %s174 = scalar_lea.hbm %s2, %s173
          %s176 = sshll.u32 %s174, 4
          %s177 = int_to_ptr.hbm [resolvable:$true] %s176
          %s178 = sshll.u32 [#allocation6], 4
          %s179 = int_to_ptr.vmem [resolvable:$true] %s178
          %181 = dma.hbm_to_vmem [thread:$0]  %s177, 128, %s179, [#allocation7]
        $region16: #{tpu_custom_call.1} parent=11 // pred_fallthru
          _
        // Predicated region
        $region17: #{tpu_custom_call.1} parent=11 // pred_check
          %p182 = pneg %p83
        $region18: #{tpu_custom_call.1} parent=11 // pred_check_branch
          %184 = sbr.rel (%p182) target = $region20
        $region19: #{tpu_custom_call.1} parent=11 // pred_region
          _
        $region20: #{tpu_custom_call.1} parent=11 // pred_fallthru
          _
        // Predicated region
        $region21: #{tpu_custom_call.1} parent=11 // pred_check
          %p185 = pneg %p104
        $region22: #{tpu_custom_call.1} parent=11 // pred_check_branch
          %187 = sbr.rel (%p185) target = $region24
        $region23: #{tpu_custom_call.1} parent=11 // pred_region
          _
        $region24: #{tpu_custom_call.1} parent=11 // pred_fallthru
          _
        // Predicated region
        $region25: #{tpu_custom_call.1} parent=11 // pred_check
          %p188 = pneg %p125
        $region26: #{tpu_custom_call.1} parent=11 // pred_check_branch
          %190 = sbr.rel (%p188) target = $region28
        $region27: #{tpu_custom_call.1} parent=11 // pred_region
          _
        $region28: #{tpu_custom_call.1} parent=11 // pred_fallthru
          _
      $region12: #{tpu_custom_call.1} parent=5 // pred_fallthru
        _
      %p191 = scmp.lt.s32.totalorder %s24, 2
      // Predicated region
      $region29: #{tpu_custom_call.1} parent=5 // pred_check
        %p192 = pneg %p191
      $region30: #{tpu_custom_call.1} parent=5 // pred_check_branch
        %194 = sbr.rel (%p192) target = $region32
      $region31: #{tpu_custom_call.1} parent=5 // pred_region
        _
      $region32: #{tpu_custom_call.1} parent=5 // pred_fallthru
        _
      %p195 = scmp.le.s32.totalorder 1, %s24
      %p196 = scmp.lt.s32.totalorder %s24, 3
      %p197 = pnand %p195, %p196
      %p198 = pneg %p197
      // Predicated region
      $region33: #{tpu_custom_call.1} parent=5 // pred_check
        _
      $region34: #{tpu_custom_call.1} parent=5 // pred_check_branch
        %200 = sbr.rel (%p197) target = $region36
      $region35: #{tpu_custom_call.1} parent=5 // pred_region
        %s201 = ssub.s32 %s24, 1
        // Predicated region
        $region37: #{tpu_custom_call.1} parent=35 // pred_check
          %p202 = pneg %p62
        $region38: #{tpu_custom_call.1} parent=35 // pred_check_branch
          %204 = sbr.rel (%p202) target = $region40
        $region39: #{tpu_custom_call.1} parent=35 // pred_region
          %206 = dma.done [#allocation7], 128
        $region40: #{tpu_custom_call.1} parent=35 // pred_fallthru
          _
        %p207 = pneg %p62
        %p208 = pneg %p59
        %p209 = pneg %p83
        %p210 = pneg %p80
        %p211 = pneg %p104
        %p212 = pneg %p101
        %p213 = pneg %p125
        %p214 = pneg %p122
        %p215 = pneg %p153
        %p216 = pneg %p150
        %s217 = sand.u32 %s140, 1
        %s218 = scalar_lea.sflag [#allocation8], %s217
        %s219 = sand.u32 %s140, 1
        %s220 = smul.addr %s219, 8
        %s221 = scalar_lea.vmem [#allocation9], %s220
        %s222 = smul.u32 %s34, 8
        %s223 = sshra.s32 %s222, 7
        %s224 = sand.u32 %s222, 127
        %s225 = sadd.s32 %s223, %s33
        %s226 = smul.u32 %s225, 128
        %s227 = sshra.s32 %s222, 7
        %s228 = sand.u32 %s222, 127
        %s229 = sadd.s32 %s226, %s228
        %s230 = sld [smem:[#allocation5 + %s229]]
        %s231 = scalar_lea.hbm %s1, %s230
        // Predicated region
        $region41: #{tpu_custom_call.1} parent=35 // pred_check
          _
        $region42: #{tpu_custom_call.1} parent=35 // pred_check_branch
          %233 = sbr.rel target = $region44
        $region43: #{tpu_custom_call.1} parent=35 // pred_region
          %234 = sst [smem:[#allocation12]] [#allocation11]
          %235 = sst [smem:[#allocation13]] [#allocation10]
        $region44: #{tpu_custom_call.1} parent=35 // pred_fallthru
          _
        %237 = shalt.err (0)
        %s239 = sshll.u32 %s231, 4
        %s240 = int_to_ptr.hbm [resolvable:$true] %s239
        %s241 = sshll.u32 [#allocation2], 4
        %s242 = int_to_ptr.vmem [resolvable:$true] %s241
        %244 = dma.hbm_to_vmem [thread:$0]  %s240, 16, %s242, [#allocation3]
        %s245 = sadd.s32 %s222, 1
        %s246 = sshra.s32 %s245, 7
        %s247 = sand.u32 %s245, 127
        %s248 = sadd.s32 %s246, %s33
        %s249 = smul.u32 %s248, 128
        %s250 = sshra.s32 %s245, 7
        %s251 = sand.u32 %s245, 127
        %s252 = sadd.s32 %s249, %s251
        %s253 = sld [smem:[#allocation5 + %s252]]
        %s254 = scalar_lea.hbm %s1, %s253
        %s255 = scalar_lea.vmem [#allocation2], 1
        %s256 = scalar_lea.sflag [#allocation3], 1
        // Predicated region
        $region45: #{tpu_custom_call.1} parent=35 // pred_check
          _
        $region46: #{tpu_custom_call.1} parent=35 // pred_check_branch
          %258 = sbr.rel target = $region48
        $region47: #{tpu_custom_call.1} parent=35 // pred_region
          %259 = sst [smem:[#allocation12]] [#allocation15]
          %260 = sst [smem:[#allocation13]] [#allocation14]
        $region48: #{tpu_custom_call.1} parent=35 // pred_fallthru
          _
        %262 = shalt.err (0)
        %s264 = sshll.u32 %s254, 4
        %s265 = int_to_ptr.hbm [resolvable:$true] %s264
        %s266 = sshll.u32 %s255, 4
        %s267 = int_to_ptr.vmem [resolvable:$true] %s266
        %269 = dma.hbm_to_vmem [thread:$0]  %s265, 16, %s267, %s256
        %s270 = sadd.s32 %s222, 2
        %s271 = sshra.s32 %s270, 7
        %s272 = sand.u32 %s270, 127
        %s273 = sadd.s32 %s271, %s33
        %s274 = smul.u32 %s273, 128
        %s275 = sshra.s32 %s270, 7
        %s276 = sand.u32 %s270, 127
        %s277 = sadd.s32 %s274, %s276
        %s278 = sld [smem:[#allocation5 + %s277]]
        %s279 = scalar_lea.hbm %s1, %s278
        %s280 = scalar_lea.vmem [#allocation2], 2
        %s281 = scalar_lea.sflag [#allocation3], 2
        // Predicated region
        $region49: #{tpu_custom_call.1} parent=35 // pred_check
          _
        $region50: #{tpu_custom_call.1} parent=35 // pred_check_branch
          %283 = sbr.rel target = $region52
        $region51: #{tpu_custom_call.1} parent=35 // pred_region
          %284 = sst [smem:[#allocation12]] [#allocation17]
          %285 = sst [smem:[#allocation13]] [#allocation16]
        $region52: #{tpu_custom_call.1} parent=35 // pred_fallthru
          _
        %287 = shalt.err (0)
        %s289 = sshll.u32 %s279, 4
        %s290 = int_to_ptr.hbm [resolvable:$true] %s289
        %s291 = sshll.u32 %s280, 4
        %s292 = int_to_ptr.vmem [resolvable:$true] %s291
        %294 = dma.hbm_to_vmem [thread:$0]  %s290, 16, %s292, %s281
        %s295 = sadd.s32 %s222, 3
        %s296 = sshra.s32 %s295, 7
        %s297 = sand.u32 %s295, 127
        %s298 = sadd.s32 %s296, %s33
        %s299 = smul.u32 %s298, 128
        %s300 = sshra.s32 %s295, 7
        %s301 = sand.u32 %s295, 127
        %s302 = sadd.s32 %s299, %s301
        %s303 = sld [smem:[#allocation5 + %s302]]
        %s304 = scalar_lea.hbm %s1, %s303
        %s305 = scalar_lea.vmem [#allocation2], 3
        %s306 = scalar_lea.sflag [#allocation3], 3
        // Predicated region
        $region53: #{tpu_custom_call.1} parent=35 // pred_check
          _
        $region54: #{tpu_custom_call.1} parent=35 // pred_check_branch
          %308 = sbr.rel target = $region56
        $region55: #{tpu_custom_call.1} parent=35 // pred_region
          %309 = sst [smem:[#allocation12]] [#allocation19]
          %310 = sst [smem:[#allocation13]] [#allocation18]
        $region56: #{tpu_custom_call.1} parent=35 // pred_fallthru
          _
        %312 = shalt.err (0)
        %s314 = sshll.u32 %s304, 4
        %s315 = int_to_ptr.hbm [resolvable:$true] %s314
        %s316 = sshll.u32 %s305, 4
        %s317 = int_to_ptr.vmem [resolvable:$true] %s316
        %319 = dma.hbm_to_vmem [thread:$0]  %s315, 16, %s317, %s306
        loop: start=4, step=1, limit=8
        $region57: #{tpu_custom_call.1} parent=35 // loop_pre_header
          _
        $region58: #{tpu_custom_call.1} parent=35 // loop_header
          %s321 = sphi 4, %s325
          %p322 = scmp.ge.s32.totalorder %s321, 8
        $region59: #{tpu_custom_call.1} parent=35 // loop_header_branch
          %324 = sbr.rel (%p322) target = $region63
        $region60: #{tpu_custom_call.1} parent=35 // loop_body
          %s326 = ssub.s32 %s321, 4
          %p327 = scmp.lt.s32.totalorder %s326, 0
          %s328 = ssub.s32 0, %s326
          %s329 = scalar_select %p327, %s328, %s326
          %s330 = sand.u32 %s329, 3
          %s331 = ssub.s32 0, %s330
          %s332 = scalar_select %p327, %s331, %s330
          %p333 = scmp.ne.s32.totalorder %s332, 0
          %p334 = scmp.lt.s32.totalorder %s332, 0
          %p335 = pnand %p334, %p333
          %p336 = pneg %p335
          %s337 = sadd.s32 %s332, 4
          %s338 = scalar_select %p336, %s337, %s332
          %s339 = scalar_lea.sflag [#allocation3], %s338
          %s340 = smul.u32 1, 1
          %s341 = sshll.u32 %s340, 4
          %342 = dma.done %s339, %s341
          %s343 = sadd.s32 %s222, %s321
          %s344 = sshra.s32 %s343, 7
          %s345 = sand.u32 %s343, 127
          %s346 = sadd.s32 %s344, %s33
          %s347 = smul.u32 %s346, 128
          %s348 = sshra.s32 %s343, 7
          %s349 = sand.u32 %s343, 127
          %s350 = sadd.s32 %s347, %s349
          %s351 = sld [smem:[#allocation5 + %s350]]
          %p352 = scmp.lt.s32.totalorder %s321, 0
          %s353 = ssub.s32 0, %s321
          %s354 = scalar_select %p352, %s353, %s321
          %s355 = sand.u32 %s354, 3
          %s356 = ssub.s32 0, %s355
          %s357 = scalar_select %p352, %s356, %s355
          %p358 = scmp.ne.s32.totalorder %s357, 0
          %p359 = scmp.lt.s32.totalorder %s357, 0
          %p360 = pnand %p359, %p358
          %p361 = pneg %p360
          %s362 = sadd.s32 %s357, 4
          %s363 = scalar_select %p361, %s362, %s357
          %s364 = scalar_lea.hbm %s1, %s351
          %s365 = scalar_lea.vmem [#allocation2], %s321
          %s366 = scalar_lea.sflag [#allocation3], %s363
          // Predicated region
          $region64: #{tpu_custom_call.1} parent=60 // pred_check
            _
          $region65: #{tpu_custom_call.1} parent=60 // pred_check_branch
            %368 = sbr.rel target = $region67
          $region66: #{tpu_custom_call.1} parent=60 // pred_region
            %369 = sst [smem:[#allocation12]] [#allocation21]
            %370 = sst [smem:[#allocation13]] [#allocation20]
          $region67: #{tpu_custom_call.1} parent=60 // pred_fallthru
            _
          %372 = shalt.err (0)
          %s374 = sshll.u32 %s364, 4
          %s375 = int_to_ptr.hbm [resolvable:$true] %s374
          %s376 = sshll.u32 %s365, 4
          %s377 = int_to_ptr.vmem [resolvable:$true] %s376
          %379 = dma.hbm_to_vmem [thread:$0]  %s375, 16, %s377, %s366
        $region61: #{tpu_custom_call.1} parent=35 // loop_footer
          %s325 = sadd.s32 1, %s321
        $region62: #{tpu_custom_call.1} parent=35 // loop_footer_branch
          %320 = sbr.rel target = $region58
        $region63: #{tpu_custom_call.1} parent=35 // loop_exit
          _
        loop: start=0, step=1, limit=4
        $region68: #{tpu_custom_call.1} parent=35 // loop_pre_header
          _
        $region69: #{tpu_custom_call.1} parent=35 // loop_header
          %s381 = sphi 0, %s385
          %p382 = scmp.ge.s32.totalorder %s381, 4
        $region70: #{tpu_custom_call.1} parent=35 // loop_header_branch
          %384 = sbr.rel (%p382) target = $region74
        $region71: #{tpu_custom_call.1} parent=35 // loop_body
          %s386 = sadd.s32 %s381, 4
          %p387 = scmp.lt.s32.totalorder %s386, 0
          %s388 = ssub.s32 0, %s386
          %s389 = scalar_select %p387, %s388, %s386
          %s390 = sand.u32 %s389, 3
          %s391 = ssub.s32 0, %s390
          %s392 = scalar_select %p387, %s391, %s390
          %p393 = scmp.ne.s32.totalorder %s392, 0
          %p394 = scmp.lt.s32.totalorder %s392, 0
          %p395 = pnand %p394, %p393
          %p396 = pneg %p395
          %s397 = sadd.s32 %s392, 4
          %s398 = scalar_select %p396, %s397, %s392
          %s399 = scalar_lea.sflag [#allocation3], %s398
          %s400 = smul.u32 1, 1
          %s401 = sshll.u32 %s400, 4
          %402 = dma.done %s399, %s401
        $region72: #{tpu_custom_call.1} parent=35 // loop_footer
          %s385 = sadd.s32 1, %s381
        $region73: #{tpu_custom_call.1} parent=35 // loop_footer_branch
          %380 = sbr.rel target = $region69
        $region74: #{tpu_custom_call.1} parent=35 // loop_exit
          _
        %v403 = vld [vmem:[#allocation2] sm:$0xff]
        %v404 = vld [vmem:[%s3] sm:$0x1]
        %v406 = vperm.slane %v404, 0
        %v408 = vadd.f32 %v403, %v406
        %v409 = vmax.f32 %v408, 0.0
        %v410 = vld [vmem:[#allocation6] sm:$0xff]
        %v411 = vadd.f32 %v409, %v410
        %412 = vadd.xlane.f32.xlu0 %v411
        %v413 = vpop.xlane.xlu0 %412
        %v414 = vmul.f32 %v413, 0.03125
        %v415 = vsub.f32 %v411, %v414
        %v416 = vmul.f32 %v415, %v415
        %417 = vadd.xlane.f32.xlu0 %v416
        %v418 = vpop.xlane.xlu0 %417
        %v419 = vmul.f32 %v414, %v414
        %v420 = vmul.f32 %v419, 96.0
        %v421 = vsub.f32 %v418, %v420
        %v422 = vmul.f32 %v421, 0.03125
        %v423 = vadd.f32 %v422, 1e-05
        %v424 = vrsqrt.pop %v423
        %v425 = vmul.f32 %v424, %v423
        %v426 = vmul.f32 %v425, %v424
        %v427 = vmul.f32 0.5, %v426
        %v428 = vsub.f32 1.5, %v427
        %v429 = vmul.f32 %v424, %v428
        %vm430 = vweird.f32 %v423
        %vm431 = vweird.f32 %v424
        %vm432 = vmor %vm430, %vm431
        %v433 = vsel %vm432, %v424, %v429
        %v434 = vmul.f32 %v415, %v433
        %v435 = vld [vmem:[%s4] sm:$0x1]
        %v437 = vperm.slane %v435, 0
        %v439 = vmul.f32 %v434, %v437
        %v440 = vld [vmem:[%s5] sm:$0x1]
        %v442 = vperm.slane %v440, 0
        %v444 = vadd.f32 %v439, %v442
        %445 = vst [vmem:[%s221] sm:$0xff] %v444
        %s446 = sand.u32 %s140, 1
        %s447 = scalar_lea.sflag [#allocation8], %s446
        %s448 = sand.u32 %s140, 1
        %s449 = smul.addr %s448, 8
        %s450 = scalar_lea.vmem [#allocation9], %s449
        // Predicated region
        $region75: #{tpu_custom_call.1} parent=35 // pred_check
          %p451 = pneg %p150
        $region76: #{tpu_custom_call.1} parent=35 // pred_check_branch
          %453 = sbr.rel (%p451) target = $region78
        $region77: #{tpu_custom_call.1} parent=35 // pred_region
          %455 = vsyncadd %s447, 0
          %s456 = sadd.s32 %s34, %s33
          %s457 = smul.addr %s456, 8
          %s458 = scalar_lea.hbm %s6, %s457
          %s460 = sshll.u32 %s450, 4
          %s461 = int_to_ptr.vmem [resolvable:$true] %s460
          %s462 = sshll.u32 %s458, 4
          %s463 = int_to_ptr.hbm [resolvable:$true] %s462
          %465 = dma.vmem_to_hbm [thread:$0]  %s461, 128, %s463, %s447
        $region78: #{tpu_custom_call.1} parent=35 // pred_fallthru
          _
      $region36: #{tpu_custom_call.1} parent=5 // pred_fallthru
        _
      %p466 = scmp.le.s32.totalorder 2, %s24
      // Predicated region
      $region79: #{tpu_custom_call.1} parent=5 // pred_check
        %p467 = pneg %p466
      $region80: #{tpu_custom_call.1} parent=5 // pred_check_branch
        %469 = sbr.rel (%p467) target = $region82
      $region81: #{tpu_custom_call.1} parent=5 // pred_region
        %s470 = ssub.s32 %s24, 2
        // Predicated region
        $region83: #{tpu_custom_call.1} parent=81 // pred_check
          %p471 = pneg %p156
        $region84: #{tpu_custom_call.1} parent=81 // pred_check_branch
          %473 = sbr.rel (%p471) target = $region86
        $region85: #{tpu_custom_call.1} parent=81 // pred_region
          %s474 = sand.u32 %s141, 1
          %s475 = scalar_lea.sflag [#allocation8], %s474
          %s476 = sand.u32 %s141, 1
          %s477 = smul.addr %s476, 8
          %s478 = scalar_lea.vmem [#allocation9], %s477
          %480 = dma.done %s475, 128
        $region86: #{tpu_custom_call.1} parent=81 // pred_fallthru
          _
      $region82: #{tpu_custom_call.1} parent=5 // pred_fallthru
        _
    $region6: #{tpu_custom_call.1} parent=1 // loop_footer
      %s28 = sadd.s32 1, %s24
    $region7: #{tpu_custom_call.1} parent=1 // loop_footer_branch
      %23 = sbr.rel target = $region3
    $region8: #{tpu_custom_call.1} parent=1 // loop_exit
      _
    %481 = vsyncpa [#allocation7], 1
    %s482 = scalar_lea.sflag [#allocation7], 1
    %483 = vsyncpa %s482, 1
    %484 = vsyncpa [#allocation8], 1
    %s485 = scalar_lea.sflag [#allocation8], 1
    %486 = vsyncpa %s485, 1
  %487 = vsyncmov [#allocation3]
  %s488 = vpop.sfrf %487
  %p489 = scmp.eq.s32.totalorder %s488, 0
  %p490 = pneg %p489
  %492 = shalt.err (%p490)
  %s493 = scalar_lea.sflag [#allocation3], 1
  %494 = vsyncmov %s493
  %s495 = vpop.sfrf %494
  %p496 = scmp.eq.s32.totalorder %s495, 0
  %p497 = pneg %p496
  %499 = shalt.err (%p497)
  %s500 = scalar_lea.sflag [#allocation3], 2
  %501 = vsyncmov %s500
  %s502 = vpop.sfrf %501
  %p503 = scmp.eq.s32.totalorder %s502, 0
  %p504 = pneg %p503
  %506 = shalt.err (%p504)
  %s507 = scalar_lea.sflag [#allocation3], 3
  %508 = vsyncmov %s507
  %s509 = vpop.sfrf %508
  %p510 = scmp.eq.s32.totalorder %s509, 0
  %p511 = pneg %p510
  %513 = shalt.err (%p511)

</llo_original>
